<compile_context>
chip_gen: v7x
topology: tpu7x:2x2x1
jax: 0.10.0
libtpu: 0.0.40
codegen_flags: <defaults>
</compile_context>

<pallas_src>
import jax
import jax.numpy as jnp
from jax.experimental import pallas as pl
from jax.experimental.pallas import tpu as pltpu


def _round_up(x: int, m: int) -> int:
    return (x + m - 1) // m * m


# ----------------------------------------------------------------------------
# Focal loss (CenterNet neg_loss) -- the only tensor with real data volume.
# ----------------------------------------------------------------------------
def _choose_focal_tiles(R, HW, itemsize, budget=2 * 1024 * 1024):
    """Pick (rows_per_tile, lanes_per_tile) for the (R=B*C, HW) heatmap view.

    Sized by VMEM bytes: ~`budget` per input per pipeline buffer, i.e.
    2 inputs x 2 buffers x 2 MiB ~= 8 MiB resident -- comfortably inside the
    scoped VMEM on every generation (incl. v7x's 64 MiB/TC) while large enough
    (>> 512 lanes) to sit near the HBM roofline.
    """
    t_max = max(128, (budget // (8 * itemsize)) // 128 * 128)
    T = min(_round_up(HW, 128), t_max)
    r_max = max(8, (budget // (T * itemsize)) // 8 * 8)
    Rt = R if R <= r_max else r_max          # Rt == R -> single row block
    # If everything collapsed into one grid step but the tile is sizeable,
    # split the spatial axis so the second TensorCore (v7x) gets a step.
    if Rt == R and T >= _round_up(HW, 128) and R * T * itemsize > (1 << 20):
        T = max(128, _round_up((HW + 1) // 2, 128))
    return Rt, T


def _make_focal_kernel(R, HW, Rt, T):
    need_row_mask = (R % Rt) != 0
    need_col_mask = (HW % T) != 0

    def kernel(x_ref, gt_ref, pos_ref, neg_ref, cnt_ref):
        x = x_ref[...].astype(jnp.float32)      # (Rt, T) raw hm logits
        gt = gt_ref[...].astype(jnp.float32)    # (Rt, T) ground-truth heatmap

        # In-kernel tail masking (replaces a jnp.pad HBM pass): blocks that run
        # past the array edge contain undefined data; force it to a harmless
        # (logit=0, gt=-1) pair that contributes exactly zero.
        if need_row_mask or need_col_mask:
            valid = None
            if need_row_mask:
                rows = (pl.program_id(0) * Rt
                        + jax.lax.broadcasted_iota(jnp.int32, (Rt, T), 0))
                valid = rows < R
            if need_col_mask:
                cols = (pl.program_id(1) * T
                        + jax.lax.broadcasted_iota(jnp.int32, (Rt, T), 1))
                vcol = cols < HW
                valid = vcol if valid is None else jnp.logical_and(valid, vcol)
            x = jnp.where(valid, x, 0.0)
            gt = jnp.where(valid, gt, -1.0)

        # Fused clamped sigmoid (CenterNet convention), numerically stable.
        # exp + log go to the EUP; the approx reciprocal rides the same slot.
        e = jnp.exp(-jnp.abs(x))
        r = pl.reciprocal(1.0 + e, approx=True)
        sig = jnp.where(x >= 0.0, r, e * r)
        pred = jnp.clip(sig, 1e-4, 1.0 - 1e-4)

        pos = gt == 1.0
        neg = jnp.logical_and(gt < 1.0, gt > -0.5)

        # pos/neg are mutually exclusive -> a single log per element.
        logp = jnp.log(jnp.where(pos, pred, 1.0 - pred))
        one_m_pred = 1.0 - pred
        one_m_gt = 1.0 - gt
        om_gt2 = one_m_gt * one_m_gt

        pos_term = jnp.where(pos, logp * one_m_pred * one_m_pred, 0.0)
        neg_term = jnp.where(neg, logp * pred * pred * om_gt2 * om_gt2, 0.0)

        # Per-row (= per (b, c)) partial sums; class weights are applied to the
        # tiny (B, C) result outside the kernel.
        pos_ref[...] = jnp.sum(pos_term, axis=1, keepdims=True)[None, None]
        neg_ref[...] = jnp.sum(neg_term, axis=1, keepdims=True)[None, None]
        cnt_ref[...] = jnp.sum(pos.astype(jnp.float32), axis=1,
                               keepdims=True)[None, None]

    return kernel


def focal_loss_pallas(hm_logits, gt, cls_weights=None):
    """neg_loss(clamped_sigmoid(hm_logits), gt, cls_weights); sigmoid fused."""
    B, C, H, W = hm_logits.shape
    R, HW = B * C, H * W

    # (B, C, H, W) -> (B*C, H*W): free reshape of a contiguous NCHW tensor.
    # Native dtype is kept (bf16 nets move half the HBM bytes); the kernel
    # casts to f32 internally.
    x2 = hm_logits.reshape(R, HW)
    gt2 = gt.reshape(R, HW)

    itemsize = max(jnp.dtype(hm_logits.dtype).itemsize,
                   jnp.dtype(gt.dtype).itemsize)
    Rt, T = _choose_focal_tiles(R, HW, itemsize)
    n_rt, n_st = pl.cdiv(R, Rt), pl.cdiv(HW, T)

    out_sds = jax.ShapeDtypeStruct((n_rt, n_st, Rt, 1), jnp.float32)
    out_spec = pl.BlockSpec((1, 1, Rt, 1), lambda r, s: (r, s, 0, 0))

    pos_p, neg_p, cnt_p = pl.pallas_call(
        _make_focal_kernel(R, HW, Rt, T),
        out_shape=(out_sds, out_sds, out_sds),
        grid=(n_rt, n_st),
        in_specs=[pl.BlockSpec((Rt, T), lambda r, s: (r, s)),
                  pl.BlockSpec((Rt, T), lambda r, s: (r, s))],
        out_specs=(out_spec, out_spec, out_spec),
        compiler_params=pltpu.CompilerParams(
            dimension_semantics=("parallel", "parallel"),
            vmem_limit_bytes=48 * 1024 * 1024),
    )(x2, gt2)

    def per_bc(p):                        # (n_rt, n_st, Rt, 1) -> (B, C)
        v = jnp.sum(p, axis=1)            # reduce over spatial tiles
        return v.reshape(-1)[:R].reshape(B, C)

    pos_bc, neg_bc, cnt_bc = per_bc(pos_p), per_bc(neg_p), per_bc(cnt_p)

    if cls_weights is None:
        cw = jnp.ones((B, C), jnp.float32)
    else:
        cw = jnp.broadcast_to(
            jnp.asarray(cls_weights, jnp.float32).reshape((-1, C)), (B, C))

    pos_loss = jnp.sum(pos_bc * cw)
    neg_loss = jnp.sum(neg_bc * cw)
    num_pos = jnp.sum(cnt_bc)
    denom = jnp.where(num_pos == 0, 1.0, num_pos)
    return jnp.where(num_pos == 0, -neg_loss, -(pos_loss + neg_loss) / denom)


# ----------------------------------------------------------------------------
# Fused RegL1Loss over all regression heads (tiny data; single pallas_call)
# ----------------------------------------------------------------------------
def gather_feat_ck(feat, ind):
    """(B, C, H, W), ind (B, K) -> (B, C, K) gathered at flat spatial indices.

    Gather only (no transpose): K stays on the fast (lane) axis, channels on
    sublanes, and no (B, HW, C) copy of the feature map is ever materialized.
    """
    B, C, H, W = feat.shape
    return jnp.take_along_axis(feat.reshape(B, C, H * W), ind[:, None, :], axis=2)


def _fused_masked_l1_kernel(x_ref, m_ref, t_ref, out_ref):
    """Per-channel sums of |x*m - t*m| for all regression heads at once.

    x_ref, m_ref, t_ref : (B, Cp, Kp) slabs, Cp % 8 == 0 (sublanes),
                          Kp % 128 == 0 (lanes); rows = concatenated head chans.
    out_ref             : (Cp, 1) per-channel absolute-difference sums.
    """
    x = x_ref[...].astype(jnp.float32)
    m = m_ref[...].astype(jnp.float32)
    t = t_ref[...].astype(jnp.float32)
    diff = jnp.abs(x * m - t * m)                   # (B, Cp, Kp)
    col = jnp.sum(diff, axis=0)                     # (Cp, Kp)
    out_ref[...] = jnp.sum(col, axis=1, keepdims=True)  # (Cp, 1)


def fused_reg_l1_losses(output, target, heads):
    """All regression heads' RegL1Loss in a single pallas_call.

    Numerator uses the mask broadcast over channels (as in `x * mask`);
    denominator is mask.sum() on the mask exactly as provided in the batch --
    both match the reference RegL1Loss literally.
    """
    present = [h for h in heads if h in output]
    if not present:
        return {}

    ind = target["ind"]
    xs, ts, ms, widths = [], [], [], []
    for h in present:
        x = gather_feat_ck(output[h], ind)                         # (B, ch, K)
        t = jnp.swapaxes(target[h], 1, 2)                          # (B, ch, K)
        m = jnp.broadcast_to(jnp.swapaxes(target[h + "_mask"], 1, 2), x.shape)
        xs.append(x.astype(jnp.float32))
        ts.append(t.astype(jnp.float32))
        ms.append(m.astype(jnp.float32))
        widths.append(x.shape[1])

    X = jnp.concatenate(xs, axis=1)
    Tt = jnp.concatenate(ts, axis=1)
    M = jnp.concatenate(ms, axis=1)
    B, Ctot, K = X.shape
    Cp, Kp = _round_up(Ctot, 8), _round_up(K, 128)

    def pad3(a):  # a few KB -- negligible
        return jnp.pad(a, ((0, 0), (0, Cp - Ctot), (0, Kp - K)))

    chsums = pl.pallas_call(
        _fused_masked_l1_kernel,
        out_shape=jax.ShapeDtypeStruct((Cp, 1), jnp.float32),
        in_specs=[pl.BlockSpec(memory_space=pltpu.MemorySpace.VMEM)] * 3,
        out_specs=pl.BlockSpec(memory_space=pltpu.MemorySpace.VMEM),
    )(pad3(X), pad3(M), pad3(Tt))[:, 0]

    losses, off = {}, 0
    for h, w in zip(present, widths):
        num = jnp.sum(chsums[off:off + w])
        den = jnp.sum(target[h + "_mask"].astype(jnp.float32)) + 0.0001
        losses[h] = num / den
        off += w
    return losses


# ----------------------------------------------------------------------------
# GenericLoss forward (glue in plain JAX)
# ----------------------------------------------------------------------------
class Opt:
    heads = {"hm": 4, "reg": 2, "wh": 2, "dep": 1, "rot": 8}
    weights_dict = {"hm": 1.0, "reg": 1.0, "wh": 0.1, "dep": 1.0, "rot": 1.0}
    obj_depth_loss_type = "L1"
    obj_depth_encode_type = "ori"
    obj_min_depth = 0.1


def _get_corr_stride_target(batch, s):
    return {k: (v[s] if isinstance(v, dict) and k != "meta" else v)
            for k, v in batch.items()}


REGRESSION_HEADS = ["reg", "wh", "dep", "dim", "amodel_offset", "latd"]


def generic_loss_forward(opt, output, batch):
    losses = {head: jnp.zeros((), jnp.float32) for head in opt.heads}
    target = _get_corr_stride_target(batch, 4)
    output = dict(output)

    # _sigmoid_output: the reference's clamped sigmoid on 'hm' is fused inside
    # the focal kernel (raw logits flow straight to Pallas); the 'dep' encode
    # stays in JAX (tiny single-channel map).
    if "dep" in output:
        if opt.obj_depth_loss_type == "L1" and opt.obj_depth_encode_type == "ori":
            output["dep"] = (1.0 / (jax.nn.sigmoid(output["dep"]) + 1e-6)
                             - 1.0 + opt.obj_min_depth - 0.1)

    if "hm" in output:
        losses["hm"] = losses["hm"] + focal_loss_pallas(
            output["hm"], target["hm"], target["class_weight"])

    reg_losses = fused_reg_l1_losses(output, target, REGRESSION_HEADS)
    for head, val in reg_losses.items():
        losses[head] = losses[head] + val

    if "rot" in output:
        # BinRotLoss._compute_rot_loss is a stub returning 0.0 in the
        # reference; its gather has no effect on the result, so skip the work.
        losses["rot"] = losses["rot"] + 0.0

    tot = jnp.zeros((), jnp.float32)
    for head in opt.heads:
        tot = tot + opt.weights_dict[head] * losses[head]

    losses["tot"] = tot
    losses_gn = {}
    return tot, losses, losses_gn


# ----------------------------------------------------------------------------
# Example run
# ----------------------------------------------------------------------------
if __name__ == "__main__":
    opt = Opt()
    # H=W=18 -> H*W=324 is NOT a multiple of 128, so the in-kernel tail
    # masking path of the focal kernel is exercised.
    B, H, W, K = 2, 18, 18, 8
    key = jax.random.PRNGKey(0)
    keys = jax.random.split(key, 16)

    # Network outputs (logits), NCHW
    output = {
        "hm": jax.random.normal(keys[0], (B, opt.heads["hm"], H, W), jnp.float32),
        "reg": jax.random.normal(keys[1], (B, 2, H, W), jnp.float32),
        "wh": jax.random.normal(keys[2], (B, 2, H, W), jnp.float32),
        "dep": jax.random.normal(keys[3], (B, 1, H, W), jnp.float32),
        "rot": jax.random.normal(keys[4], (B, 8, H, W), jnp.float32),
    }

    # Ground-truth heatmap: values in [0, 0.95) with a few exact 1.0 peaks.
    gt_hm = jax.random.uniform(keys[5], (B, opt.heads["hm"], H, W),
                               jnp.float32, 0.0, 0.95)
    gt_hm = gt_hm.at[:, :, 4, 4].set(1.0)
    gt_hm = gt_hm.at[:, :, 9, 11].set(1.0)

    ind = jax.random.randint(keys[6], (B, K), 0, H * W, jnp.int32)

    def mk_mask(k):
        return (jax.random.uniform(k, (B, K, 1)) > 0.3).astype(jnp.float32)

    batch = {
        "image": jax.random.normal(keys[7], (B, 3, 4 * H, 4 * W), jnp.float32),
        "hm": {4: gt_hm},
        "class_weight": jnp.ones((B, opt.heads["hm"]), jnp.float32),
        "ind": {4: ind},
        "reg": {4: jax.random.uniform(keys[8], (B, K, 2), jnp.float32)},
        "reg_mask": {4: mk_mask(keys[9])},
        "wh": {4: jax.random.uniform(keys[10], (B, K, 2), jnp.float32) * 10.0},
        "wh_mask": {4: mk_mask(keys[11])},
        "dep": {4: jax.random.uniform(keys[12], (B, K, 1), jnp.float32) * 20.0},
        "dep_mask": {4: mk_mask(keys[13])},
        "rot_mask": {4: mk_mask(keys[14])},
        "rotbin": {4: jax.random.randint(keys[15], (B, K, 2), 0, 2, jnp.int32)},
        "rotres": {4: jnp.zeros((B, K, 2), jnp.float32)},
        "meta": {"dummy": 0},
    }

    tot, losses, _ = generic_loss_forward(opt, output, batch)
    jax.block_until_ready(tot)
    for h in losses:
        jax.block_until_ready(losses[h])

    assert jnp.isfinite(tot), "total loss is not finite"
    print("KERNEL_OK")
</pallas_src>

<mosaic_0001>
module attributes {stable_mosaic.version = 11 : i64} {
  func.func @kernel(%arg0: i32, %arg1: i32, %arg2: memref<8x384xf32, #tpu.memory_space<vmem>>, %arg3: memref<8x384xf32, #tpu.memory_space<vmem>>, %arg4: memref<1x1x8x1xf32, #tpu.memory_space<vmem>>, %arg5: memref<1x1x8x1xf32, #tpu.memory_space<vmem>>, %arg6: memref<1x1x8x1xf32, #tpu.memory_space<vmem>>) attributes {dimension_semantics = [#tpu.dimension_semantics<parallel>, #tpu.dimension_semantics<parallel>], iteration_bounds = array<i64: 1, 1>, scalar_prefetch = 0 : i64, scratch_operands = 0 : i64, tpu.core_type = #tpu.core_type<tc>, window_params = [{transform_indices = @transform_0, window_bounds = array<i64: 8, 384>}, {transform_indices = @transform_1, window_bounds = array<i64: 8, 384>}, {transform_indices = @transform_2, window_bounds = array<i64: 1, 1, 8, 1>}, {transform_indices = @transform_3, window_bounds = array<i64: 1, 1, 8, 1>}, {transform_indices = @transform_4, window_bounds = array<i64: 1, 1, 8, 1>}]} {
    %c0 = arith.constant 0 : index
    %c0_0 = arith.constant 0 : index
    %0 = vector.load %arg2[%c0, %c0_0] : memref<8x384xf32, #tpu.memory_space<vmem>>, vector<8x384xf32>
    %c0_1 = arith.constant 0 : index
    %c0_2 = arith.constant 0 : index
    %1 = vector.load %arg3[%c0_1, %c0_2] : memref<8x384xf32, #tpu.memory_space<vmem>>, vector<8x384xf32>
    %c384_i32 = arith.constant 384 : i32
    %2 = arith.muli %arg1, %c384_i32 : i32
    %3 = tpu.iota {dimensions = array<i32: 1>} : vector<8x384xi32>
    %4 = vector.broadcast %2 : i32 to vector<8x384xi32>
    %5 = arith.addi %4, %3 : vector<8x384xi32>
    %c324_i32 = arith.constant 324 : i32
    %6 = vector.broadcast %c324_i32 : i32 to vector<8x384xi32>
    %7 = arith.cmpi slt, %5, %6 : vector<8x384xi32>
    %cst = arith.constant 0.000000e+00 : f32
    %8 = vector.broadcast %cst : f32 to vector<8x384xf32>
    %9 = arith.select %7, %0, %8 : vector<8x384xi1>, vector<8x384xf32>
    %cst_3 = arith.constant -1.000000e+00 : f32
    %10 = vector.broadcast %cst_3 : f32 to vector<8x384xf32>
    %11 = arith.select %7, %1, %10 : vector<8x384xi1>, vector<8x384xf32>
    %12 = math.absf %9 : vector<8x384xf32>
    %cst_4 = arith.constant 0.000000e+00 : f32
    %13 = vector.broadcast %cst_4 : f32 to vector<8x384xf32>
    %14 = arith.subf %13, %12 : vector<8x384xf32>
    %15 = math.exp %14 : vector<8x384xf32>
    %cst_5 = arith.constant 1.000000e+00 : f32
    %16 = vector.broadcast %cst_5 : f32 to vector<8x384xf32>
    %17 = arith.addf %16, %15 : vector<8x384xf32>
    %18 = tpu.reciprocal %17 {approx = true} : vector<8x384xf32> -> vector<8x384xf32>
    %cst_6 = arith.constant 0.000000e+00 : f32
    %19 = vector.broadcast %cst_6 : f32 to vector<8x384xf32>
    %20 = arith.cmpf oge, %9, %19 : vector<8x384xf32>
    %21 = arith.mulf %15, %18 : vector<8x384xf32>
    %22 = arith.select %20, %18, %21 : vector<8x384xi1>, vector<8x384xf32>
    %cst_7 = arith.constant 9.99999974E-5 : f32
    %cst_8 = arith.constant 0.999899983 : f32
    %23 = vector.broadcast %cst_7 : f32 to vector<8x384xf32>
    %24 = arith.maximumf %23, %22 : vector<8x384xf32>
    %25 = vector.broadcast %cst_8 : f32 to vector<8x384xf32>
    %26 = arith.minimumf %25, %24 : vector<8x384xf32>
    %cst_9 = arith.constant 1.000000e+00 : f32
    %27 = vector.broadcast %cst_9 : f32 to vector<8x384xf32>
    %28 = arith.cmpf oeq, %11, %27 : vector<8x384xf32>
    %cst_10 = arith.constant 1.000000e+00 : f32
    %29 = vector.broadcast %cst_10 : f32 to vector<8x384xf32>
    %30 = arith.cmpf olt, %11, %29 : vector<8x384xf32>
    %cst_11 = arith.constant -5.000000e-01 : f32
    %31 = vector.broadcast %cst_11 : f32 to vector<8x384xf32>
    %32 = arith.cmpf ogt, %11, %31 : vector<8x384xf32>
    %33 = arith.andi %30, %32 : vector<8x384xi1>
    %cst_12 = arith.constant 1.000000e+00 : f32
    %34 = vector.broadcast %cst_12 : f32 to vector<8x384xf32>
    %35 = arith.subf %34, %26 : vector<8x384xf32>
    %36 = arith.select %28, %26, %35 : vector<8x384xi1>, vector<8x384xf32>
    %37 = math.log %36 : vector<8x384xf32>
    %cst_13 = arith.constant 1.000000e+00 : f32
    %38 = vector.broadcast %cst_13 : f32 to vector<8x384xf32>
    %39 = arith.subf %38, %26 : vector<8x384xf32>
    %cst_14 = arith.constant 1.000000e+00 : f32
    %40 = vector.broadcast %cst_14 : f32 to vector<8x384xf32>
    %41 = arith.subf %40, %11 : vector<8x384xf32>
    %42 = arith.mulf %41, %41 : vector<8x384xf32>
    %43 = arith.mulf %37, %39 : vector<8x384xf32>
    %44 = arith.mulf %43, %39 : vector<8x384xf32>
    %cst_15 = arith.constant 0.000000e+00 : f32
    %45 = vector.broadcast %cst_15 : f32 to vector<8x384xf32>
    %46 = arith.select %28, %44, %45 : vector<8x384xi1>, vector<8x384xf32>
    %47 = arith.mulf %37, %26 : vector<8x384xf32>
    %48 = arith.mulf %47, %26 : vector<8x384xf32>
    %49 = arith.mulf %48, %42 : vector<8x384xf32>
    %50 = arith.mulf %49, %42 : vector<8x384xf32>
    %cst_16 = arith.constant 0.000000e+00 : f32
    %51 = vector.broadcast %cst_16 : f32 to vector<8x384xf32>
    %52 = arith.select %33, %50, %51 : vector<8x384xi1>, vector<8x384xf32>
    %cst_17 = arith.constant dense<0.000000e+00> : vector<8xf32>
    %53 = vector.multi_reduction <add>, %46, %cst_17 [1] : vector<8x384xf32> to vector<8xf32>
    %54 = vector.shape_cast %53 : vector<8xf32> to vector<8x1xf32>
    %55 = vector.shape_cast %54 : vector<8x1xf32> to vector<1x1x8x1xf32>
    %c0_18 = arith.constant 0 : index
    %c0_19 = arith.constant 0 : index
    %c0_20 = arith.constant 0 : index
    %c0_21 = arith.constant 0 : index
    %56 = vector.load %arg4[%c0_18, %c0_19, %c0_20, %c0_21] : memref<1x1x8x1xf32, #tpu.memory_space<vmem>>, vector<1x1x8x1xf32>
    tpu.vector_store %arg4[%c0_18, %c0_19, %c0_20, %c0_21], %55 {strides = array<i32>} : memref<1x1x8x1xf32, #tpu.memory_space<vmem>>, vector<1x1x8x1xf32>,
    %cst_22 = arith.constant dense<0.000000e+00> : vector<8xf32>
    %57 = vector.multi_reduction <add>, %52, %cst_22 [1] : vector<8x384xf32> to vector<8xf32>
    %58 = vector.shape_cast %57 : vector<8xf32> to vector<8x1xf32>
    %59 = vector.shape_cast %58 : vector<8x1xf32> to vector<1x1x8x1xf32>
    %c0_23 = arith.constant 0 : index
    %c0_24 = arith.constant 0 : index
    %c0_25 = arith.constant 0 : index
    %c0_26 = arith.constant 0 : index
    %60 = vector.load %arg5[%c0_23, %c0_24, %c0_25, %c0_26] : memref<1x1x8x1xf32, #tpu.memory_space<vmem>>, vector<1x1x8x1xf32>
    tpu.vector_store %arg5[%c0_23, %c0_24, %c0_25, %c0_26], %59 {strides = array<i32>} : memref<1x1x8x1xf32, #tpu.memory_space<vmem>>, vector<1x1x8x1xf32>,
    %61 = arith.extui %28 : vector<8x384xi1> to vector<8x384xi32>
    %62 = arith.sitofp %61 : vector<8x384xi32> to vector<8x384xf32>
    %cst_27 = arith.constant dense<0.000000e+00> : vector<8xf32>
    %63 = vector.multi_reduction <add>, %62, %cst_27 [1] : vector<8x384xf32> to vector<8xf32>
    %64 = vector.shape_cast %63 : vector<8xf32> to vector<8x1xf32>
    %65 = vector.shape_cast %64 : vector<8x1xf32> to vector<1x1x8x1xf32>
    %c0_28 = arith.constant 0 : index
    %c0_29 = arith.constant 0 : index
    %c0_30 = arith.constant 0 : index
    %c0_31 = arith.constant 0 : index
    %66 = vector.load %arg6[%c0_28, %c0_29, %c0_30, %c0_31] : memref<1x1x8x1xf32, #tpu.memory_space<vmem>>, vector<1x1x8x1xf32>
    tpu.vector_store %arg6[%c0_28, %c0_29, %c0_30, %c0_31], %65 {strides = array<i32>} : memref<1x1x8x1xf32, #tpu.memory_space<vmem>>, vector<1x1x8x1xf32>,
    return
  }
  func.func @transform_0(%arg0: i32, %arg1: i32) -> (i32, i32) {
    %c0_i32 = arith.constant 0 : i32
    return %arg0, %arg1 : i32, i32
  }
  func.func @transform_1(%arg0: i32, %arg1: i32) -> (i32, i32) {
    %c0_i32 = arith.constant 0 : i32
    return %arg0, %arg1 : i32, i32
  }
  func.func @transform_2(%arg0: i32, %arg1: i32) -> (i32, i32, i32, i32) {
    %c0_i32 = arith.constant 0 : i32
    %c0_i32_0 = arith.constant 0 : i32
    %c0_i32_1 = arith.constant 0 : i32
    return %arg0, %arg1, %c0_i32, %c0_i32_0 : i32, i32, i32, i32
  }
  func.func @transform_3(%arg0: i32, %arg1: i32) -> (i32, i32, i32, i32) {
    %c0_i32 = arith.constant 0 : i32
    %c0_i32_0 = arith.constant 0 : i32
    %c0_i32_1 = arith.constant 0 : i32
    return %arg0, %arg1, %c0_i32, %c0_i32_0 : i32, i32, i32, i32
  }
  func.func @transform_4(%arg0: i32, %arg1: i32) -> (i32, i32, i32, i32) {
    %c0_i32 = arith.constant 0 : i32
    %c0_i32_0 = arith.constant 0 : i32
    %c0_i32_1 = arith.constant 0 : i32
    return %arg0, %arg1, %c0_i32, %c0_i32_0 : i32, i32, i32, i32
  }
}

</mosaic_0001>

<llo_original>
// kernel: tpu_custom_call.1
$region0: #{tpu_custom_call.1}
  #allocation0 [shape = 'u32[]', space=smem, size = 0x4, offset = 0x4, fixed_abs, tag = 'smem constant byte address 0x4 - core index']
  #allocation1 [shape = 'u32[144,128]{1,0:T(1,128)}', space=vmem, size = 0x12000, scoped, tag = 'internal scratch']
  %s0 = inlined_call_operand.hbm [shape: f32[8,324], index: 0, kind: input, shape index: {}]
  %s1 = inlined_call_operand.hbm [shape: f32[8,324], index: 1, kind: input, shape index: {}]
  %s2 = inlined_call_operand.vmem [shape: f32[1,1,8,1], index: 2, kind: output, shape index: {0}]
  %s3 = inlined_call_operand.vmem [shape: f32[1,1,8,1], index: 3, kind: output, shape index: {1}]
  %s4 = inlined_call_operand.vmem [shape: f32[1,1,8,1], index: 4, kind: output, shape index: {2}]
  %5 = xla_tuple %s2, %s3, %s4
  %s6 = sld [smem:[#allocation0]]
  $region42: #{tpu_custom_call.1} parent=0
    _
  %s8 = ssub.s32 1, %s6
  %s9 = scalar_select 0, %s8, %s6
  $region1: #{tpu_custom_call.1} parent=0
    #allocation2 [shape = 'u8[12288]{0}', space=vmem, size = 0x3000, scoped, tag = 'input window, operand 0, single buffered']
    #allocation3 [shape = 's32[1]{0}', space=sflag, size = 0x4, scoped, tag = 'scoped memory for tpu_custom_call.1']
    #allocation4 [shape = 'u8[12288]{0}', space=vmem, size = 0x3000, scoped, tag = 'input window, operand 1, single buffered']
    #allocation5 [shape = 's32[1]{0}', space=sflag, size = 0x4, scoped, tag = 'scoped memory for tpu_custom_call.1']
    %10 = vsyncpa [#allocation3], 0
    %11 = vsyncpa [#allocation5], 0
    // Predicated region
    $region2: #{tpu_custom_call.1} parent=1 // pred_check
      _
    $region3: #{tpu_custom_call.1} parent=1 // pred_check_branch
      %13 = sbr.rel (0) target = $region5
    $region4: #{tpu_custom_call.1} parent=1 // pred_region
      %s15 = ssub.s32 384, 384
      %16 = vsyncadd [#allocation3], %s15
      %s18 = sshll.u32 [#allocation2], 4
      %s19 = int_to_ptr.vmem [resolvable:$true] %s18
      %21 = dma.hbm_to_vmem [thread:$0]  %s0, 384, %s19, [#allocation3]
    $region5: #{tpu_custom_call.1} parent=1 // pred_fallthru
      _
    // Predicated region
    $region6: #{tpu_custom_call.1} parent=1 // pred_check
      _
    $region7: #{tpu_custom_call.1} parent=1 // pred_check_branch
      %23 = sbr.rel (0) target = $region9
    $region8: #{tpu_custom_call.1} parent=1 // pred_region
      %s25 = ssub.s32 384, 384
      %26 = vsyncadd [#allocation5], %s25
      %s28 = sshll.u32 [#allocation4], 4
      %s29 = int_to_ptr.vmem [resolvable:$true] %s28
      %31 = dma.hbm_to_vmem [thread:$0]  %s1, 384, %s29, [#allocation5]
    $region9: #{tpu_custom_call.1} parent=1 // pred_fallthru
      _
    // Predicated region
    $region10: #{tpu_custom_call.1} parent=1 // pred_check
      _
    $region11: #{tpu_custom_call.1} parent=1 // pred_check_branch
      %33 = sbr.rel (0) target = $region13
    $region12: #{tpu_custom_call.1} parent=1 // pred_region
      %34 = dma.done [#allocation3], 384
    $region13: #{tpu_custom_call.1} parent=1 // pred_fallthru
      _
    // Predicated region
    $region14: #{tpu_custom_call.1} parent=1 // pred_check
      _
    $region15: #{tpu_custom_call.1} parent=1 // pred_check_branch
      %36 = sbr.rel (0) target = $region17
    $region16: #{tpu_custom_call.1} parent=1 // pred_region
      %37 = dma.done [#allocation5], 384
    $region17: #{tpu_custom_call.1} parent=1 // pred_fallthru
      _
    %v38 = vld [vmem:[#allocation2] sm:$0xff]
    %v39 = vld [vmem:[#allocation2 + $0x8] sm:$0xff]
    %v40 = vld [vmem:[#allocation2 + $0x10] sm:$0xff]
    %v41 = vld [vmem:[#allocation4] sm:$0xff]
    %v42 = vld [vmem:[#allocation4 + $0x8] sm:$0xff]
    %v43 = vld [vmem:[#allocation4 + $0x10] sm:$0xff]
    %s44 = smul.u32 0, 384
    %v45 = vlaneseq
    %v46 = vand.u32 %v45, 127
    %v47 = vadd.s32 %v46, 128
    %v48 = vadd.s32 %v46, 256
    %v49 = vstv %s44
    %v50 = vadd.s32 %v49, %v46
    %v51 = vadd.s32 %v49, %v47
    %v52 = vadd.s32 %v49, %v48
    %vm53 = vcmp.lt.s32.totalorder %v50, 324
    %vm54 = vcmp.lt.s32.totalorder %v51, 324
    %vm55 = vcmp.lt.s32.totalorder %v52, 324
    %v56 = vsel %vm53, %v38, 0.0
    %v57 = vsel %vm54, %v39, 0.0
    %v58 = vsel %vm55, %v40, 0.0
    %v59 = vsel %vm53, %v41, -1.0
    %v60 = vsel %vm54, %v42, -1.0
    %v61 = vsel %vm55, %v43, -1.0
    %v62 = vand.u32 2147483647, %v56
    %v63 = vand.u32 2147483647, %v57
    %v64 = vand.u32 2147483647, %v58
    %v65 = vsub.f32 0.0, %v62
    %v66 = vsub.f32 0.0, %v63
    %v67 = vsub.f32 0.0, %v64
    %v68 = vmul.f32 %v65, 1.442695
    %v69 = vpow.pop %v68
    %v70 = vmul.f32 %v66, 1.442695
    %v71 = vpow.pop %v70
    %v72 = vmul.f32 %v67, 1.442695
    %v73 = vpow.pop %v72
    %v74 = vadd.f32 %v69, 1.0
    %v75 = vadd.f32 %v71, 1.0
    %v76 = vadd.f32 %v73, 1.0
    %v77 = vrcp.pop %v74
    %v78 = vrcp.pop %v75
    %v79 = vrcp.pop %v76
    %vm80 = vcmp.ge.f32.partialorder %v56, 0.0
    %vm81 = vcmp.ge.f32.partialorder %v57, 0.0
    %vm82 = vcmp.ge.f32.partialorder %v58, 0.0
    %v83 = vmul.f32 %v69, %v77
    %v84 = vmul.f32 %v71, %v78
    %v85 = vmul.f32 %v73, %v79
    %v86 = vsel %vm80, %v77, %v83
    %v87 = vsel %vm81, %v78, %v84
    %v88 = vsel %vm82, %v79, %v85
    %v89 = vmax.f32 %v86, 0.0001
    %v90 = vmax.f32 %v87, 0.0001
    %v91 = vmax.f32 %v88, 0.0001
    %v92 = vmin.f32 %v89, 0.9999
    %v93 = vmin.f32 %v90, 0.9999
    %v94 = vmin.f32 %v91, 0.9999
    %vm95 = vcmp.eq.f32.partialorder %v59, 1.0
    %vm96 = vcmp.eq.f32.partialorder %v60, 1.0
    %vm97 = vcmp.eq.f32.partialorder %v61, 1.0
    %vm98 = vcmp.lt.f32.partialorder %v59, 1.0
    %vm99 = vcmp.lt.f32.partialorder %v60, 1.0
    %vm100 = vcmp.lt.f32.partialorder %v61, 1.0
    %vm101 = vcmp.gt.f32.partialorder %v59, -0.5
    %vm102 = vcmp.gt.f32.partialorder %v60, -0.5
    %vm103 = vcmp.gt.f32.partialorder %v61, -0.5
    %vm104 = vmand %vm98, %vm101
    %vm105 = vmand %vm99, %vm102
    %vm106 = vmand %vm100, %vm103
    %v107 = vsub.f32 1.0, %v92
    %v108 = vsub.f32 1.0, %v93
    %v109 = vsub.f32 1.0, %v94
    %v110 = vsel %vm95, %v92, %v107
    %v111 = vsel %vm96, %v93, %v108
    %v112 = vsel %vm97, %v94, %v109
    %v113 = vlog2.pop %v110
    %v114 = vmul.f32 %v113, 0.6931472
    %v115 = vlog2.pop %v111
    %v116 = vmul.f32 %v115, 0.6931472
    %v117 = vlog2.pop %v112
    %v118 = vmul.f32 %v117, 0.6931472
    %v119 = vsub.f32 1.0, %v59
    %v120 = vsub.f32 1.0, %v60
    %v121 = vsub.f32 1.0, %v61
    %v122 = vmul.f32 %v119, %v119
    %v123 = vmul.f32 %v120, %v120
    %v124 = vmul.f32 %v121, %v121
    %v125 = vmul.f32 %v114, %v107
    %v126 = vmul.f32 %v116, %v108
    %v127 = vmul.f32 %v118, %v109
    %v128 = vmul.f32 %v125, %v107
    %v129 = vmul.f32 %v126, %v108
    %v130 = vmul.f32 %v127, %v109
    %v131 = vsel %vm95, %v128, 0.0
    %v132 = vsel %vm96, %v129, 0.0
    %v133 = vsel %vm97, %v130, 0.0
    %v134 = vmul.f32 %v114, %v92
    %v135 = vmul.f32 %v116, %v93
    %v136 = vmul.f32 %v118, %v94
    %v137 = vmul.f32 %v134, %v92
    %v138 = vmul.f32 %v135, %v93
    %v139 = vmul.f32 %v136, %v94
    %v140 = vmul.f32 %v137, %v122
    %v141 = vmul.f32 %v138, %v123
    %v142 = vmul.f32 %v139, %v124
    %v143 = vmul.f32 %v140, %v122
    %v144 = vmul.f32 %v141, %v123
    %v145 = vmul.f32 %v142, %v124
    %v146 = vsel %vm104, %v143, 0.0
    %v147 = vsel %vm105, %v144, 0.0
    %v148 = vsel %vm106, %v145, 0.0
    %v149 = vadd.f32 %v131, %v132
    %v150 = vadd.f32 %v149, %v133
    %151 = vadd.xlane.f32.xlu0 %v150
    %v152 = vpop.xlane.xlu0 %151
    %vm153 = vcmask 7168
    %154 = vst.msk [vmem:[%s2] sm:$0xff] %vm153, %v152
    %v155 = vadd.f32 %v146, %v147
    %v156 = vadd.f32 %v155, %v148
    %157 = vadd.xlane.f32.xlu0 %v156
    %v158 = vpop.xlane.xlu0 %157
    %159 = vst.msk [vmem:[%s3] sm:$0xff] %vm153, %v158
    %v160 = vsel %vm95, 1, 0
    %v161 = vsel %vm96, 1, 0
    %v162 = vsel %vm97, 1, 0
    %v163 = vcvt.s32.f32 %v160
    %v164 = vcvt.s32.f32 %v161
    %v165 = vcvt.s32.f32 %v162
    %v166 = vadd.f32 %v163, %v164
    %v167 = vadd.f32 %v166, %v165
    %168 = vadd.xlane.f32.xlu0 %v167
    %v169 = vpop.xlane.xlu0 %168
    %170 = vst.msk [vmem:[%s4] sm:$0xff] %vm153, %v169
    // Predicated region
    $region18: #{tpu_custom_call.1} parent=1 // pred_check
      _
    $region19: #{tpu_custom_call.1} parent=1 // pred_check_branch
      %172 = sbr.rel (0) target = $region21
    $region20: #{tpu_custom_call.1} parent=1 // pred_region
      _
    $region21: #{tpu_custom_call.1} parent=1 // pred_fallthru
      _
    // Predicated region
    $region22: #{tpu_custom_call.1} parent=1 // pred_check
      _
    $region23: #{tpu_custom_call.1} parent=1 // pred_check_branch
      %174 = sbr.rel (0) target = $region25
    $region24: #{tpu_custom_call.1} parent=1 // pred_region
      _
    $region25: #{tpu_custom_call.1} parent=1 // pred_fallthru
      _
    // Predicated region
    $region26: #{tpu_custom_call.1} parent=1 // pred_check
      _
    $region27: #{tpu_custom_call.1} parent=1 // pred_check_branch
      %176 = sbr.rel (0) target = $region29
    $region28: #{tpu_custom_call.1} parent=1 // pred_region
      _
    $region29: #{tpu_custom_call.1} parent=1 // pred_fallthru
      _
    // Predicated region
    $region30: #{tpu_custom_call.1} parent=1 // pred_check
      _
    $region31: #{tpu_custom_call.1} parent=1 // pred_check_branch
      %178 = sbr.rel (0) target = $region33
    $region32: #{tpu_custom_call.1} parent=1 // pred_region
      _
    $region33: #{tpu_custom_call.1} parent=1 // pred_fallthru
      _
    // Predicated region
    $region34: #{tpu_custom_call.1} parent=1 // pred_check
      _
    $region35: #{tpu_custom_call.1} parent=1 // pred_check_branch
      %180 = sbr.rel (0) target = $region37
    $region36: #{tpu_custom_call.1} parent=1 // pred_region
      _
    $region37: #{tpu_custom_call.1} parent=1 // pred_fallthru
      _
    // Predicated region
    $region38: #{tpu_custom_call.1} parent=1 // pred_check
      _
    $region39: #{tpu_custom_call.1} parent=1 // pred_check_branch
      %182 = sbr.rel (0) target = $region41
    $region40: #{tpu_custom_call.1} parent=1 // pred_region
      _
    $region41: #{tpu_custom_call.1} parent=1 // pred_fallthru
      _
    %183 = vsyncpa [#allocation3], 1
    %184 = vsyncpa [#allocation5], 1

</llo_original>
